<compile_context>
chip_gen: v5e
topology: v5e:2x2
jax: 0.10.0
libtpu: 0.0.40
codegen_flags: <defaults>
</compile_context>

<pallas_src>
import functools
import numpy as np
import jax
import jax.numpy as jnp
from jax import lax
from jax.experimental import pallas as pl
from jax.experimental.pallas import tpu as pltpu

# ---------------- configuration (consistent with the module) ----------------
GE = 32              # graph embedding size  (friend_ge_options['embedding_size'])
SE = 32              # sentence embedding size (lm_options['embedding_size'])
D = 3 * GE + SE      # all_3graphs_size = 128
N_CLASSES = 3
N_OUT = 8            # final linear output padded to 8 lanes (block dim == full array dim)
N_HIDDEN = 2         # nn_options['n_hidden_layers']
EPS = 1e-5           # PyTorch nn.LayerNorm default eps
GRIDLESS_MAX_BATCH = 256  # above this, always take the pipelined batched path


def _ln_stats_normalize(x):
    """LayerNorm w/o affine: two independent reductions, var clamped >= 0 (no NaN)."""
    m1 = jnp.mean(x, axis=-1, keepdims=True)
    m2 = jnp.mean(x * x, axis=-1, keepdims=True)
    var = jnp.maximum(m2 - m1 * m1, 0.0)
    return (x - m1) * lax.rsqrt(var + EPS)


def stance_kernel(x_ref, wh_ref, bh_ref, wf_ref, bf_ref, out_ref, *, n_hidden):
    # x_ref: (4, tb, 32) f32 -- stacked [friend, like, follower, sentence] embeddings.
    # LayerNorm (affine folded into wh[0]/bh[0] offline); stats in f32, then cast to bf16.
    fg = _ln_stats_normalize(x_ref[0]).astype(jnp.bfloat16)
    lg = _ln_stats_normalize(x_ref[1]).astype(jnp.bfloat16)
    og = _ln_stats_normalize(x_ref[2]).astype(jnp.bfloat16)
    se = _ln_stats_normalize(x_ref[3]).astype(jnp.bfloat16)

    # First hidden layer without concatenation: sum of 4 partial bf16 matmuls against
    # static row-slices of wh[0] (offsets 0/32/64/96 -> bf16 (16,128) tile aligned).
    h = (jnp.dot(fg, wh_ref[0, 0 * GE:1 * GE, :], preferred_element_type=jnp.float32)
         + jnp.dot(lg, wh_ref[0, 1 * GE:2 * GE, :], preferred_element_type=jnp.float32)
         + jnp.dot(og, wh_ref[0, 2 * GE:3 * GE, :], preferred_element_type=jnp.float32)
         + jnp.dot(se, wh_ref[0, 3 * GE:3 * GE + SE, :], preferred_element_type=jnp.float32)
         + bh_ref[0])                          # bh_ref[0] is (1, D) f32
    h = jnp.maximum(h, 0.0)                    # ReLU in f32 (dropout = identity)

    # Remaining hidden layers: Linear(D, D) + ReLU (bf16 operands, f32 accumulate).
    for l in range(1, n_hidden):
        h = jnp.dot(h.astype(jnp.bfloat16), wh_ref[l],
                    preferred_element_type=jnp.float32) + bh_ref[l]
        h = jnp.maximum(h, 0.0)

    # Final Linear(D, n_classes) -- padded to N_OUT lanes, sliced in the wrapper.
    out_ref[...] = (jnp.dot(h.astype(jnp.bfloat16), wf_ref[...],
                            preferred_element_type=jnp.float32) + bf_ref[...])


def _cost_estimate(batch):
    flops = 2 * batch * D * (D * N_HIDDEN + N_OUT)
    transcendentals = 4 * batch  # one rsqrt per embedding row
    bytes_accessed = (4 * batch * GE * 4          # stacked f32 inputs
                      + batch * N_OUT * 4         # f32 output
                      + N_HIDDEN * D * D * 2      # bf16 hidden weights
                      + N_HIDDEN * D * 4          # f32 hidden biases
                      + D * N_OUT * 2 + N_OUT * 4)  # bf16 final weight + f32 bias
    return pl.CostEstimate(flops=flops, transcendentals=transcendentals,
                           bytes_accessed=bytes_accessed)


def _call_gridless(x, wh, bh, wf, bf):
    """Small batch: single invocation, whole arrays resident in VMEM, no grid."""
    batch = x.shape[1]
    vmem = lambda: pl.BlockSpec(memory_space=pltpu.MemorySpace.VMEM)
    return pl.pallas_call(
        functools.partial(stance_kernel, n_hidden=N_HIDDEN),
        out_shape=jax.ShapeDtypeStruct((batch, N_OUT), jnp.float32),
        in_specs=[vmem() for _ in range(5)],
        out_specs=vmem(),
        cost_estimate=_cost_estimate(batch),
    )(x, wh, bh, wf, bf)


def _call_batched(x, wh, bh, wf, bf, tb):
    """Large batch: tile the (pre-padded) batch axis; weights stay VMEM-resident via
    constant index_maps.  Batch axis is 'parallel' so both v7x TensorCores are used."""
    batch = x.shape[1]  # already a multiple of tb
    return pl.pallas_call(
        functools.partial(stance_kernel, n_hidden=N_HIDDEN),
        out_shape=jax.ShapeDtypeStruct((batch, N_OUT), jnp.float32),
        grid=(batch // tb,),
        in_specs=[
            pl.BlockSpec((4, tb, GE), lambda i: (0, i, 0)),      # stacked embeddings
            pl.BlockSpec((N_HIDDEN, D, D), lambda i: (0, 0, 0)),  # bf16 hidden weights
            pl.BlockSpec((N_HIDDEN, 1, D), lambda i: (0, 0, 0)),  # f32 hidden biases
            pl.BlockSpec((D, N_OUT), lambda i: (0, 0)),            # bf16 final weight
            pl.BlockSpec((1, N_OUT), lambda i: (0, 0)),            # f32 final bias
        ],
        out_specs=pl.BlockSpec((tb, N_OUT), lambda i: (i, 0)),
        compiler_params=pltpu.CompilerParams(dimension_semantics=("parallel",)),
        cost_estimate=_cost_estimate(batch),
    )(x, wh, bh, wf, bf)


def stance_classifier_forward(friend_ge, like_ge, follower_ge, sent_emb, params,
                              *, batch_tile=512):
    assert GE == SE, "input stacking assumes equal graph/sentence embedding widths"
    # Stack the four 32-wide embeddings -> one (4, batch, 32) input (1 DMA instead of 4).
    x = jnp.stack([friend_ge, like_ge, follower_ge, sent_emb], axis=0)
    batch = x.shape[1]
    wargs = (params["wh"], params["bh"], params["wf_pad"], params["bf_pad"])

    if batch <= GRIDLESS_MAX_BATCH:
        out = _call_gridless(x, *wargs)
    else:
        # Pick tb: big (amortize ~0.35us/step overhead) but keep >= 2 grid steps (v7x).
        tb = batch_tile
        while tb > 128 and pl.cdiv(batch, tb) < 2:
            tb //= 2
        padded = pl.cdiv(batch, tb) * tb
        if padded != batch:
            x = jnp.pad(x, ((0, 0), (0, padded - batch), (0, 0)))
        out = _call_batched(x, *wargs, tb=tb)
    return out[:batch, :N_CLASSES]


# ---------------- parameters ----------------
def init_raw_params(key):
    ks = jax.random.split(key, 8)
    return {
        "g_gamma": 1.0 + 0.1 * jax.random.normal(ks[0], (GE,), jnp.float32),
        "g_beta": 0.1 * jax.random.normal(ks[1], (GE,), jnp.float32),
        "s_gamma": 1.0 + 0.1 * jax.random.normal(ks[2], (SE,), jnp.float32),
        "s_beta": 0.1 * jax.random.normal(ks[3], (SE,), jnp.float32),
        "wh": 0.05 * jax.random.normal(ks[4], (N_HIDDEN, D, D), jnp.float32),
        "bh": 0.01 * jax.random.normal(ks[5], (N_HIDDEN, D), jnp.float32),
        "wf": 0.05 * jax.random.normal(ks[6], (D, N_CLASSES), jnp.float32),
        "bf": 0.01 * jax.random.normal(ks[7], (N_CLASSES,), jnp.float32),
    }


def prepare_kernel_params(raw):
    """Fold the LayerNorm affine into the first hidden layer; cast matmul weights to bf16."""
    gamma_full = jnp.concatenate([raw["g_gamma"]] * 3 + [raw["s_gamma"]])   # (D,)
    beta_full = jnp.concatenate([raw["g_beta"]] * 3 + [raw["s_beta"]])      # (D,)
    w0p = gamma_full[:, None] * raw["wh"][0]                                # (D, D)
    b0p = raw["bh"][0] + beta_full @ raw["wh"][0]                           # (D,)
    wh_folded = raw["wh"].at[0].set(w0p).astype(jnp.bfloat16)               # (N_HIDDEN, D, D) bf16
    bh_folded = raw["bh"].at[0].set(b0p)[:, None, :]                        # (N_HIDDEN, 1, D) f32
    wf_pad = (jnp.zeros((D, N_OUT), jnp.float32)
              .at[:, :N_CLASSES].set(raw["wf"]).astype(jnp.bfloat16))       # (D, N_OUT) bf16
    bf_pad = jnp.zeros((1, N_OUT), jnp.float32).at[0, :N_CLASSES].set(raw["bf"])
    return {"wh": wh_folded, "bh": bh_folded, "wf_pad": wf_pad, "bf_pad": bf_pad}


# ---------------- pure-JAX reference (original, unfolded f32 math) ----------------
def reference_forward(friend_ge, like_ge, follower_ge, sent_emb, raw):
    def ln(x, g, b):
        mu = jnp.mean(x, axis=-1, keepdims=True)
        var = jnp.mean((x - mu) ** 2, axis=-1, keepdims=True)  # biased, like torch
        return (x - mu) / jnp.sqrt(var + EPS) * g + b

    h = jnp.concatenate([ln(friend_ge, raw["g_gamma"], raw["g_beta"]),
                         ln(like_ge, raw["g_gamma"], raw["g_beta"]),
                         ln(follower_ge, raw["g_gamma"], raw["g_beta"]),
                         ln(sent_emb, raw["s_gamma"], raw["s_beta"])], axis=-1)
    for l in range(N_HIDDEN):
        h = jnp.maximum(h @ raw["wh"][l] + raw["bh"][l], 0.0)
    return h @ raw["wf"] + raw["bf"]


if __name__ == "__main__":
    key = jax.random.PRNGKey(0)
    k_in, k_p = jax.random.split(key)
    raw = init_raw_params(k_p)
    params = prepare_kernel_params(raw)

    # ---- small batch: grid-less path ----
    B = 8
    k1, k2, k3, k4 = jax.random.split(k_in, 4)
    friend_ge = jax.random.normal(k1, (B, GE), jnp.float32)
    like_ge = jax.random.normal(k2, (B, GE), jnp.float32)
    follower_ge = jax.random.normal(k3, (B, GE), jnp.float32)
    sent_emb = jax.random.normal(k4, (B, SE), jnp.float32)  # stands in for lm(...) output

    out = stance_classifier_forward(friend_ge, like_ge, follower_ge, sent_emb, params)
    out = jax.block_until_ready(out)
    ref = reference_forward(friend_ge, like_ge, follower_ge, sent_emb, raw)
    np.testing.assert_allclose(np.asarray(out), np.asarray(ref), rtol=2e-2, atol=2e-2)
    assert out.shape == (B, N_CLASSES)

    # ---- larger batch: pipelined batched path with wrapper-side padding ----
    BB = 1000  # > 256, not a multiple of tb -> exercises padding + 2 parallel grid steps
    k5, k6, k7, k8 = jax.random.split(jax.random.PRNGKey(1), 4)
    fg2 = jax.random.normal(k5, (BB, GE), jnp.float32)
    lg2 = jax.random.normal(k6, (BB, GE), jnp.float32)
    og2 = jax.random.normal(k7, (BB, GE), jnp.float32)
    se2 = jax.random.normal(k8, (BB, SE), jnp.float32)

    out2 = stance_classifier_forward(fg2, lg2, og2, se2, params, batch_tile=512)
    out2 = jax.block_until_ready(out2)
    ref2 = reference_forward(fg2, lg2, og2, se2, raw)
    np.testing.assert_allclose(np.asarray(out2), np.asarray(ref2), rtol=2e-2, atol=2e-2)
    assert out2.shape == (BB, N_CLASSES)

    print("KERNEL_OK")
</pallas_src>

<mosaic_0001>
module attributes {stable_mosaic.version = 11 : i64} {
  func.func @stance_kernel(%arg0: memref<4x8x32xf32, #tpu.memory_space<vmem>>, %arg1: memref<2x128x128xbf16, #tpu.memory_space<vmem>>, %arg2: memref<2x1x128xf32, #tpu.memory_space<vmem>>, %arg3: memref<128x8xbf16, #tpu.memory_space<vmem>>, %arg4: memref<1x8xf32, #tpu.memory_space<vmem>>, %arg5: memref<8x8xf32, #tpu.memory_space<vmem>>) attributes {dimension_semantics = [], scalar_prefetch = 0 : i64, scratch_operands = 0 : i64, tpu.core_type = #tpu.core_type<tc>} {
    %c0 = arith.constant 0 : index
    %c0_0 = arith.constant 0 : index
    %c0_1 = arith.constant 0 : index
    %0 = vector.load %arg0[%c0, %c0_0, %c0_1] : memref<4x8x32xf32, #tpu.memory_space<vmem>>, vector<1x8x32xf32>
    %1 = vector.shape_cast %0 : vector<1x8x32xf32> to vector<8x32xf32>
    %cst = arith.constant dense<0.000000e+00> : vector<8xf32>
    %2 = vector.multi_reduction <add>, %1, %cst [1] : vector<8x32xf32> to vector<8xf32>
    %3 = vector.shape_cast %2 : vector<8xf32> to vector<8x1xf32>
    %cst_2 = arith.constant 3.200000e+01 : f32
    %4 = vector.broadcast %cst_2 : f32 to vector<8x1xf32>
    %5 = arith.divf %3, %4 : vector<8x1xf32>
    %6 = arith.mulf %1, %1 : vector<8x32xf32>
    %cst_3 = arith.constant dense<0.000000e+00> : vector<8xf32>
    %7 = vector.multi_reduction <add>, %6, %cst_3 [1] : vector<8x32xf32> to vector<8xf32>
    %8 = vector.shape_cast %7 : vector<8xf32> to vector<8x1xf32>
    %cst_4 = arith.constant 3.200000e+01 : f32
    %9 = vector.broadcast %cst_4 : f32 to vector<8x1xf32>
    %10 = arith.divf %8, %9 : vector<8x1xf32>
    %11 = arith.mulf %5, %5 : vector<8x1xf32>
    %12 = arith.subf %10, %11 : vector<8x1xf32>
    %cst_5 = arith.constant 0.000000e+00 : f32
    %13 = vector.broadcast %cst_5 : f32 to vector<8x1xf32>
    %14 = arith.maximumf %12, %13 : vector<8x1xf32>
    %15 = vector.broadcast %5 : vector<8x1xf32> to vector<8x32xf32>
    %16 = arith.subf %1, %15 : vector<8x32xf32>
    %cst_6 = arith.constant 9.99999974E-6 : f32
    %17 = vector.broadcast %cst_6 : f32 to vector<8x1xf32>
    %18 = arith.addf %14, %17 : vector<8x1xf32>
    %19 = math.rsqrt %18 : vector<8x1xf32>
    %20 = vector.broadcast %19 : vector<8x1xf32> to vector<8x32xf32>
    %21 = arith.mulf %16, %20 : vector<8x32xf32>
    %22 = arith.truncf %21 : vector<8x32xf32> to vector<8x32xbf16>
    %c1 = arith.constant 1 : index
    %c0_7 = arith.constant 0 : index
    %c0_8 = arith.constant 0 : index
    %23 = vector.load %arg0[%c1, %c0_7, %c0_8] : memref<4x8x32xf32, #tpu.memory_space<vmem>>, vector<1x8x32xf32>
    %24 = vector.shape_cast %23 : vector<1x8x32xf32> to vector<8x32xf32>
    %cst_9 = arith.constant dense<0.000000e+00> : vector<8xf32>
    %25 = vector.multi_reduction <add>, %24, %cst_9 [1] : vector<8x32xf32> to vector<8xf32>
    %26 = vector.shape_cast %25 : vector<8xf32> to vector<8x1xf32>
    %cst_10 = arith.constant 3.200000e+01 : f32
    %27 = vector.broadcast %cst_10 : f32 to vector<8x1xf32>
    %28 = arith.divf %26, %27 : vector<8x1xf32>
    %29 = arith.mulf %24, %24 : vector<8x32xf32>
    %cst_11 = arith.constant dense<0.000000e+00> : vector<8xf32>
    %30 = vector.multi_reduction <add>, %29, %cst_11 [1] : vector<8x32xf32> to vector<8xf32>
    %31 = vector.shape_cast %30 : vector<8xf32> to vector<8x1xf32>
    %cst_12 = arith.constant 3.200000e+01 : f32
    %32 = vector.broadcast %cst_12 : f32 to vector<8x1xf32>
    %33 = arith.divf %31, %32 : vector<8x1xf32>
    %34 = arith.mulf %28, %28 : vector<8x1xf32>
    %35 = arith.subf %33, %34 : vector<8x1xf32>
    %cst_13 = arith.constant 0.000000e+00 : f32
    %36 = vector.broadcast %cst_13 : f32 to vector<8x1xf32>
    %37 = arith.maximumf %35, %36 : vector<8x1xf32>
    %38 = vector.broadcast %28 : vector<8x1xf32> to vector<8x32xf32>
    %39 = arith.subf %24, %38 : vector<8x32xf32>
    %cst_14 = arith.constant 9.99999974E-6 : f32
    %40 = vector.broadcast %cst_14 : f32 to vector<8x1xf32>
    %41 = arith.addf %37, %40 : vector<8x1xf32>
    %42 = math.rsqrt %41 : vector<8x1xf32>
    %43 = vector.broadcast %42 : vector<8x1xf32> to vector<8x32xf32>
    %44 = arith.mulf %39, %43 : vector<8x32xf32>
    %45 = arith.truncf %44 : vector<8x32xf32> to vector<8x32xbf16>
    %c2 = arith.constant 2 : index
    %c0_15 = arith.constant 0 : index
    %c0_16 = arith.constant 0 : index
    %46 = vector.load %arg0[%c2, %c0_15, %c0_16] : memref<4x8x32xf32, #tpu.memory_space<vmem>>, vector<1x8x32xf32>
    %47 = vector.shape_cast %46 : vector<1x8x32xf32> to vector<8x32xf32>
    %cst_17 = arith.constant dense<0.000000e+00> : vector<8xf32>
    %48 = vector.multi_reduction <add>, %47, %cst_17 [1] : vector<8x32xf32> to vector<8xf32>
    %49 = vector.shape_cast %48 : vector<8xf32> to vector<8x1xf32>
    %cst_18 = arith.constant 3.200000e+01 : f32
    %50 = vector.broadcast %cst_18 : f32 to vector<8x1xf32>
    %51 = arith.divf %49, %50 : vector<8x1xf32>
    %52 = arith.mulf %47, %47 : vector<8x32xf32>
    %cst_19 = arith.constant dense<0.000000e+00> : vector<8xf32>
    %53 = vector.multi_reduction <add>, %52, %cst_19 [1] : vector<8x32xf32> to vector<8xf32>
    %54 = vector.shape_cast %53 : vector<8xf32> to vector<8x1xf32>
    %cst_20 = arith.constant 3.200000e+01 : f32
    %55 = vector.broadcast %cst_20 : f32 to vector<8x1xf32>
    %56 = arith.divf %54, %55 : vector<8x1xf32>
    %57 = arith.mulf %51, %51 : vector<8x1xf32>
    %58 = arith.subf %56, %57 : vector<8x1xf32>
    %cst_21 = arith.constant 0.000000e+00 : f32
    %59 = vector.broadcast %cst_21 : f32 to vector<8x1xf32>
    %60 = arith.maximumf %58, %59 : vector<8x1xf32>
    %61 = vector.broadcast %51 : vector<8x1xf32> to vector<8x32xf32>
    %62 = arith.subf %47, %61 : vector<8x32xf32>
    %cst_22 = arith.constant 9.99999974E-6 : f32
    %63 = vector.broadcast %cst_22 : f32 to vector<8x1xf32>
    %64 = arith.addf %60, %63 : vector<8x1xf32>
    %65 = math.rsqrt %64 : vector<8x1xf32>
    %66 = vector.broadcast %65 : vector<8x1xf32> to vector<8x32xf32>
    %67 = arith.mulf %62, %66 : vector<8x32xf32>
    %68 = arith.truncf %67 : vector<8x32xf32> to vector<8x32xbf16>
    %c3 = arith.constant 3 : index
    %c0_23 = arith.constant 0 : index
    %c0_24 = arith.constant 0 : index
    %69 = vector.load %arg0[%c3, %c0_23, %c0_24] : memref<4x8x32xf32, #tpu.memory_space<vmem>>, vector<1x8x32xf32>
    %70 = vector.shape_cast %69 : vector<1x8x32xf32> to vector<8x32xf32>
    %cst_25 = arith.constant dense<0.000000e+00> : vector<8xf32>
    %71 = vector.multi_reduction <add>, %70, %cst_25 [1] : vector<8x32xf32> to vector<8xf32>
    %72 = vector.shape_cast %71 : vector<8xf32> to vector<8x1xf32>
    %cst_26 = arith.constant 3.200000e+01 : f32
    %73 = vector.broadcast %cst_26 : f32 to vector<8x1xf32>
    %74 = arith.divf %72, %73 : vector<8x1xf32>
    %75 = arith.mulf %70, %70 : vector<8x32xf32>
    %cst_27 = arith.constant dense<0.000000e+00> : vector<8xf32>
    %76 = vector.multi_reduction <add>, %75, %cst_27 [1] : vector<8x32xf32> to vector<8xf32>
    %77 = vector.shape_cast %76 : vector<8xf32> to vector<8x1xf32>
    %cst_28 = arith.constant 3.200000e+01 : f32
    %78 = vector.broadcast %cst_28 : f32 to vector<8x1xf32>
    %79 = arith.divf %77, %78 : vector<8x1xf32>
    %80 = arith.mulf %74, %74 : vector<8x1xf32>
    %81 = arith.subf %79, %80 : vector<8x1xf32>
    %cst_29 = arith.constant 0.000000e+00 : f32
    %82 = vector.broadcast %cst_29 : f32 to vector<8x1xf32>
    %83 = arith.maximumf %81, %82 : vector<8x1xf32>
    %84 = vector.broadcast %74 : vector<8x1xf32> to vector<8x32xf32>
    %85 = arith.subf %70, %84 : vector<8x32xf32>
    %cst_30 = arith.constant 9.99999974E-6 : f32
    %86 = vector.broadcast %cst_30 : f32 to vector<8x1xf32>
    %87 = arith.addf %83, %86 : vector<8x1xf32>
    %88 = math.rsqrt %87 : vector<8x1xf32>
    %89 = vector.broadcast %88 : vector<8x1xf32> to vector<8x32xf32>
    %90 = arith.mulf %85, %89 : vector<8x32xf32>
    %91 = arith.truncf %90 : vector<8x32xf32> to vector<8x32xbf16>
    %c0_31 = arith.constant 0 : index
    %c0_32 = arith.constant 0 : index
    %c0_33 = arith.constant 0 : index
    %92 = vector.load %arg1[%c0_31, %c0_32, %c0_33] : memref<2x128x128xbf16, #tpu.memory_space<vmem>>, vector<1x32x128xbf16>
    %93 = vector.shape_cast %92 : vector<1x32x128xbf16> to vector<32x128xbf16>
    %cst_34 = arith.constant dense<0.000000e+00> : vector<8x128xf32>
    %94 = tpu.matmul %22, %93, %cst_34 {dimension_numbers = #tpu.dot_dimension_numbers<[1], [0], [0], [1], [0, 0, 1, 1], [], []>} : vector<8x32xbf16>, vector<32x128xbf16>, vector<8x128xf32> -> vector<8x128xf32>
    %c0_35 = arith.constant 0 : index
    %c32 = arith.constant 32 : index
    %c0_36 = arith.constant 0 : index
    %95 = vector.load %arg1[%c0_35, %c32, %c0_36] : memref<2x128x128xbf16, #tpu.memory_space<vmem>>, vector<1x32x128xbf16>
    %96 = vector.shape_cast %95 : vector<1x32x128xbf16> to vector<32x128xbf16>
    %cst_37 = arith.constant dense<0.000000e+00> : vector<8x128xf32>
    %97 = tpu.matmul %45, %96, %cst_37 {dimension_numbers = #tpu.dot_dimension_numbers<[1], [0], [0], [1], [0, 0, 1, 1], [], []>} : vector<8x32xbf16>, vector<32x128xbf16>, vector<8x128xf32> -> vector<8x128xf32>
    %98 = arith.addf %94, %97 : vector<8x128xf32>
    %c0_38 = arith.constant 0 : index
    %c64 = arith.constant 64 : index
    %c0_39 = arith.constant 0 : index
    %99 = vector.load %arg1[%c0_38, %c64, %c0_39] : memref<2x128x128xbf16, #tpu.memory_space<vmem>>, vector<1x32x128xbf16>
    %100 = vector.shape_cast %99 : vector<1x32x128xbf16> to vector<32x128xbf16>
    %cst_40 = arith.constant dense<0.000000e+00> : vector<8x128xf32>
    %101 = tpu.matmul %68, %100, %cst_40 {dimension_numbers = #tpu.dot_dimension_numbers<[1], [0], [0], [1], [0, 0, 1, 1], [], []>} : vector<8x32xbf16>, vector<32x128xbf16>, vector<8x128xf32> -> vector<8x128xf32>
    %102 = arith.addf %98, %101 : vector<8x128xf32>
    %c0_41 = arith.constant 0 : index
    %c96 = arith.constant 96 : index
    %c0_42 = arith.constant 0 : index
    %103 = vector.load %arg1[%c0_41, %c96, %c0_42] : memref<2x128x128xbf16, #tpu.memory_space<vmem>>, vector<1x32x128xbf16>
    %104 = vector.shape_cast %103 : vector<1x32x128xbf16> to vector<32x128xbf16>
    %cst_43 = arith.constant dense<0.000000e+00> : vector<8x128xf32>
    %105 = tpu.matmul %91, %104, %cst_43 {dimension_numbers = #tpu.dot_dimension_numbers<[1], [0], [0], [1], [0, 0, 1, 1], [], []>} : vector<8x32xbf16>, vector<32x128xbf16>, vector<8x128xf32> -> vector<8x128xf32>
    %106 = arith.addf %102, %105 : vector<8x128xf32>
    %c0_44 = arith.constant 0 : index
    %c0_45 = arith.constant 0 : index
    %c0_46 = arith.constant 0 : index
    %107 = vector.load %arg2[%c0_44, %c0_45, %c0_46] : memref<2x1x128xf32, #tpu.memory_space<vmem>>, vector<1x1x128xf32>
    %108 = vector.shape_cast %107 : vector<1x1x128xf32> to vector<1x128xf32>
    %109 = vector.broadcast %108 : vector<1x128xf32> to vector<8x128xf32>
    %110 = arith.addf %106, %109 : vector<8x128xf32>
    %cst_47 = arith.constant 0.000000e+00 : f32
    %111 = vector.broadcast %cst_47 : f32 to vector<8x128xf32>
    %112 = arith.maximumf %110, %111 : vector<8x128xf32>
    %113 = arith.truncf %112 : vector<8x128xf32> to vector<8x128xbf16>
    %c1_48 = arith.constant 1 : index
    %c0_49 = arith.constant 0 : index
    %c0_50 = arith.constant 0 : index
    %114 = vector.load %arg1[%c1_48, %c0_49, %c0_50] : memref<2x128x128xbf16, #tpu.memory_space<vmem>>, vector<1x128x128xbf16>
    %115 = vector.shape_cast %114 : vector<1x128x128xbf16> to vector<128x128xbf16>
    %cst_51 = arith.constant dense<0.000000e+00> : vector<8x128xf32>
    %116 = tpu.matmul %113, %115, %cst_51 {dimension_numbers = #tpu.dot_dimension_numbers<[1], [0], [0], [1], [0, 0, 1, 1], [], []>} : vector<8x128xbf16>, vector<128x128xbf16>, vector<8x128xf32> -> vector<8x128xf32>
    %c1_52 = arith.constant 1 : index
    %c0_53 = arith.constant 0 : index
    %c0_54 = arith.constant 0 : index
    %117 = vector.load %arg2[%c1_52, %c0_53, %c0_54] : memref<2x1x128xf32, #tpu.memory_space<vmem>>, vector<1x1x128xf32>
    %118 = vector.shape_cast %117 : vector<1x1x128xf32> to vector<1x128xf32>
    %119 = vector.broadcast %118 : vector<1x128xf32> to vector<8x128xf32>
    %120 = arith.addf %116, %119 : vector<8x128xf32>
    %cst_55 = arith.constant 0.000000e+00 : f32
    %121 = vector.broadcast %cst_55 : f32 to vector<8x128xf32>
    %122 = arith.maximumf %120, %121 : vector<8x128xf32>
    %123 = arith.truncf %122 : vector<8x128xf32> to vector<8x128xbf16>
    %c0_56 = arith.constant 0 : index
    %c0_57 = arith.constant 0 : index
    %124 = vector.load %arg3[%c0_56, %c0_57] : memref<128x8xbf16, #tpu.memory_space<vmem>>, vector<128x8xbf16>
    %cst_58 = arith.constant dense<0.000000e+00> : vector<8x8xf32>
    %125 = tpu.matmul %123, %124, %cst_58 {dimension_numbers = #tpu.dot_dimension_numbers<[1], [0], [0], [1], [0, 0, 1, 1], [], []>} : vector<8x128xbf16>, vector<128x8xbf16>, vector<8x8xf32> -> vector<8x8xf32>
    %c0_59 = arith.constant 0 : index
    %c0_60 = arith.constant 0 : index
    %126 = vector.load %arg4[%c0_59, %c0_60] : memref<1x8xf32, #tpu.memory_space<vmem>>, vector<1x8xf32>
    %127 = vector.broadcast %126 : vector<1x8xf32> to vector<8x8xf32>
    %128 = arith.addf %125, %127 : vector<8x8xf32>
    %c0_61 = arith.constant 0 : index
    %c0_62 = arith.constant 0 : index
    %129 = vector.load %arg5[%c0_61, %c0_62] : memref<8x8xf32, #tpu.memory_space<vmem>>, vector<8x8xf32>
    tpu.vector_store %arg5[%c0_61, %c0_62], %128 {strides = array<i32>} : memref<8x8xf32, #tpu.memory_space<vmem>>, vector<8x8xf32>,
    return
  }
}

</mosaic_0001>

<llo_original>
// kernel: tpu_custom_call.1
$region0: #{tpu_custom_call.1}
  #allocation0 [shape = 'u32[]', space=smem, size = 0x4, offset = 0x4, fixed_abs, tag = 'smem constant byte address 0x4 - core index']
  #allocation1 [shape = 'u32[72,128]{1,0:T(1,128)}', space=vmem, size = 0x9000, scoped, tag = 'internal scratch']
  %s0 = inlined_call_operand.vmem [shape: f32[4,8,32], index: 0, kind: input, shape index: {}]
  %s1 = inlined_call_operand.hbm [shape: bf16[2,128,128], index: 1, kind: input, shape index: {}]
  %s2 = inlined_call_operand.vmem [shape: f32[2,1,128], index: 2, kind: input, shape index: {}]
  %s3 = inlined_call_operand.vmem [shape: bf16[128,8], index: 3, kind: input, shape index: {}]
  %s4 = inlined_call_operand.vmem [shape: f32[1,8], index: 4, kind: input, shape index: {}]
  %s5 = inlined_call_operand.hbm [shape: f32[8,8], index: 5, kind: output, shape index: {}]
  %s6 = sld [smem:[#allocation0]]
  $region34: #{tpu_custom_call.1} parent=0
    _
  %s8 = ssub.s32 1, %s6
  %s9 = scalar_select 0, %s8, %s6
  $region1: #{tpu_custom_call.1} parent=0
    #allocation2 [shape = 'u8[65536]{0}', space=vmem, size = 0x10000, scoped, tag = 'input window, operand 1, single buffered']
    #allocation3 [shape = 's32[1]{0}', space=sflag, size = 0x4, scoped, tag = 'scoped memory for tpu_custom_call.1']
    #allocation4 [shape = 's32[1]{0}', space=sflag, size = 0x4, scoped, tag = 'scoped memory for tpu_custom_call.1']
    #allocation5 [shape = 'u8[4096]{0}', space=vmem, size = 0x1000, scoped, tag = 'output window, operand 0, single buffered']
    %10 = vsyncpa [#allocation3], 0
    %11 = vsyncpa [#allocation4], 0
    // Predicated region
    $region2: #{tpu_custom_call.1} parent=1 // pred_check
      _
    $region3: #{tpu_custom_call.1} parent=1 // pred_check_branch
      %13 = sbr.rel (0) target = $region5
    $region4: #{tpu_custom_call.1} parent=1 // pred_region
      _
    $region5: #{tpu_custom_call.1} parent=1 // pred_fallthru
      _
    // Predicated region
    $region6: #{tpu_custom_call.1} parent=1 // pred_check
      _
    $region7: #{tpu_custom_call.1} parent=1 // pred_check_branch
      %15 = sbr.rel (0) target = $region9
    $region8: #{tpu_custom_call.1} parent=1 // pred_region
      %17 = vsyncadd [#allocation3], 0
      %s18 = sshll.u32 %s1, 4
      %s19 = int_to_ptr.hbm [resolvable:$true] %s18
      %s20 = sshll.u32 [#allocation2], 4
      %s21 = int_to_ptr.vmem [resolvable:$true] %s20
      %26 = dma.hbm_to_vmem [thread:$0]  %s19, 2048, %s21, [#allocation3], 64, 64, 4
    $region9: #{tpu_custom_call.1} parent=1 // pred_fallthru
      _
    // Predicated region
    $region10: #{tpu_custom_call.1} parent=1 // pred_check
      _
    $region11: #{tpu_custom_call.1} parent=1 // pred_check_branch
      %28 = sbr.rel (0) target = $region13
    $region12: #{tpu_custom_call.1} parent=1 // pred_region
      _
    $region13: #{tpu_custom_call.1} parent=1 // pred_fallthru
      _
    // Predicated region
    $region14: #{tpu_custom_call.1} parent=1 // pred_check
      _
    $region15: #{tpu_custom_call.1} parent=1 // pred_check_branch
      %30 = sbr.rel (0) target = $region17
    $region16: #{tpu_custom_call.1} parent=1 // pred_region
      _
    $region17: #{tpu_custom_call.1} parent=1 // pred_fallthru
      _
    // Predicated region
    $region18: #{tpu_custom_call.1} parent=1 // pred_check
      _
    $region19: #{tpu_custom_call.1} parent=1 // pred_check_branch
      %32 = sbr.rel (0) target = $region21
    $region20: #{tpu_custom_call.1} parent=1 // pred_region
      _
    $region21: #{tpu_custom_call.1} parent=1 // pred_fallthru
      _
    // Predicated region
    $region22: #{tpu_custom_call.1} parent=1 // pred_check
      _
    $region23: #{tpu_custom_call.1} parent=1 // pred_check_branch
      %34 = sbr.rel (0) target = $region25
    $region24: #{tpu_custom_call.1} parent=1 // pred_region
      %36 = dma.done [#allocation3], 2048
    $region25: #{tpu_custom_call.1} parent=1 // pred_fallthru
      _
    %v38 = vld [vmem:[%s0] sm:$0xff]
    %vm39 = vcmask 261120
    %v40 = vsel %vm39, %v38, 0.0
    %41 = vadd.xlane.f32.xlu0 %v40
    %v42 = vpop.xlane.xlu0 %41
    %v43 = vrcp.pop 32.0
    %v44 = vmul.f32 32.0, %v43
    %v45 = vsub.f32 1.0, %v44
    %v46 = vmul.f32 %v43, %v45
    %v47 = vadd.f32 %v43, %v46
    %vm48 = vweird.f32 %v43
    %v49 = vsel %vm48, %v43, %v47
    %v50 = vmul.f32 %v42, %v49
    %v51 = vmul.f32 %v38, %v38
    %v52 = vsel %vm39, %v51, 0.0
    %53 = vadd.xlane.f32.xlu0 %v52
    %v54 = vpop.xlane.xlu0 %53
    %v55 = vmul.f32 %v54, %v49
    %v56 = vmul.f32 %v50, %v50
    %v57 = vsub.f32 %v55, %v56
    %v58 = vmax.f32 %v57, 0.0
    %v59 = vsub.f32 %v38, %v50
    %v60 = vadd.f32 %v58, 1e-05
    %v61 = vrsqrt.pop %v60
    %v62 = vmul.f32 %v61, %v60
    %v63 = vmul.f32 %v62, %v61
    %v64 = vmul.f32 0.5, %v63
    %v65 = vsub.f32 1.5, %v64
    %v66 = vmul.f32 %v61, %v65
    %vm67 = vweird.f32 %v60
    %vm68 = vweird.f32 %v61
    %vm69 = vmor %vm67, %vm68
    %v70 = vsel %vm69, %v61, %v66
    %v71 = vmul.f32 %v59, %v70
    %v72 = vpack.c.bf16 %v71, %v71
    %s73 = scalar_lea.vmem %s0, 8
    %v74 = vld [vmem:[%s73] sm:$0xff]
    %v75 = vsel %vm39, %v74, 0.0
    %76 = vadd.xlane.f32.xlu0 %v75
    %v77 = vpop.xlane.xlu0 %76
    %v78 = vmul.f32 %v77, %v49
    %v79 = vmul.f32 %v74, %v74
    %v80 = vsel %vm39, %v79, 0.0
    %81 = vadd.xlane.f32.xlu0 %v80
    %v82 = vpop.xlane.xlu0 %81
    %v83 = vmul.f32 %v82, %v49
    %v84 = vmul.f32 %v78, %v78
    %v85 = vsub.f32 %v83, %v84
    %v86 = vmax.f32 %v85, 0.0
    %v87 = vsub.f32 %v74, %v78
    %v88 = vadd.f32 %v86, 1e-05
    %v89 = vrsqrt.pop %v88
    %v90 = vmul.f32 %v89, %v88
    %v91 = vmul.f32 %v90, %v89
    %v92 = vmul.f32 0.5, %v91
    %v93 = vsub.f32 1.5, %v92
    %v94 = vmul.f32 %v89, %v93
    %vm95 = vweird.f32 %v88
    %vm96 = vweird.f32 %v89
    %vm97 = vmor %vm95, %vm96
    %v98 = vsel %vm97, %v89, %v94
    %v99 = vmul.f32 %v87, %v98
    %v100 = vpack.c.bf16 %v99, %v99
    %s101 = scalar_lea.vmem %s0, 16
    %v102 = vld [vmem:[%s101] sm:$0xff]
    %v103 = vsel %vm39, %v102, 0.0
    %104 = vadd.xlane.f32.xlu0 %v103
    %v105 = vpop.xlane.xlu0 %104
    %v106 = vmul.f32 %v105, %v49
    %v107 = vmul.f32 %v102, %v102
    %v108 = vsel %vm39, %v107, 0.0
    %109 = vadd.xlane.f32.xlu0 %v108
    %v110 = vpop.xlane.xlu0 %109
    %v111 = vmul.f32 %v110, %v49
    %v112 = vmul.f32 %v106, %v106
    %v113 = vsub.f32 %v111, %v112
    %v114 = vmax.f32 %v113, 0.0
    %v115 = vsub.f32 %v102, %v106
    %v116 = vadd.f32 %v114, 1e-05
    %v117 = vrsqrt.pop %v116
    %v118 = vmul.f32 %v117, %v116
    %v119 = vmul.f32 %v118, %v117
    %v120 = vmul.f32 0.5, %v119
    %v121 = vsub.f32 1.5, %v120
    %v122 = vmul.f32 %v117, %v121
    %vm123 = vweird.f32 %v116
    %vm124 = vweird.f32 %v117
    %vm125 = vmor %vm123, %vm124
    %v126 = vsel %vm125, %v117, %v122
    %v127 = vmul.f32 %v115, %v126
    %v128 = vpack.c.bf16 %v127, %v127
    %s129 = scalar_lea.vmem %s0, 24
    %v130 = vld [vmem:[%s129] sm:$0xff]
    %v131 = vsel %vm39, %v130, 0.0
    %132 = vadd.xlane.f32.xlu0 %v131
    %v133 = vpop.xlane.xlu0 %132
    %v134 = vmul.f32 %v133, %v49
    %v135 = vmul.f32 %v130, %v130
    %v136 = vsel %vm39, %v135, 0.0
    %137 = vadd.xlane.f32.xlu0 %v136
    %v138 = vpop.xlane.xlu0 %137
    %v139 = vmul.f32 %v138, %v49
    %v140 = vmul.f32 %v134, %v134
    %v141 = vsub.f32 %v139, %v140
    %v142 = vmax.f32 %v141, 0.0
    %v143 = vsub.f32 %v130, %v134
    %v144 = vadd.f32 %v142, 1e-05
    %v145 = vrsqrt.pop %v144
    %v146 = vmul.f32 %v145, %v144
    %v147 = vmul.f32 %v146, %v145
    %v148 = vmul.f32 0.5, %v147
    %v149 = vsub.f32 1.5, %v148
    %v150 = vmul.f32 %v145, %v149
    %vm151 = vweird.f32 %v144
    %vm152 = vweird.f32 %v145
    %vm153 = vmor %vm151, %vm152
    %v154 = vsel %vm153, %v145, %v150
    %v155 = vmul.f32 %v143, %v154
    %v156 = vpack.c.bf16 %v155, %v155
    %v157 = vld [vmem:[#allocation2] sm:$0xf]
    %v158 = vld [vmem:[#allocation2 + $0x4] sm:$0xf]
    %v159 = vld [vmem:[#allocation2 + $0x8] sm:$0xf]
    %v160 = vld [vmem:[#allocation2 + $0xc] sm:$0xf]
    %v161 = vld [vmem:[#allocation2 + $0x10] sm:$0xf]
    %v162 = vld [vmem:[#allocation2 + $0x14] sm:$0xf]
    %v163 = vld [vmem:[#allocation2 + $0x18] sm:$0xf]
    %v164 = vld [vmem:[#allocation2 + $0x1c] sm:$0xf]
    %v169 = vunpack.c.l.b16 %v161
    %v170 = vunpack.c.l.b16 %v162
    %v171 = vunpack.c.l.b16 %v163
    %v172 = vunpack.c.l.b16 %v164
    %v173 = vpack.c.b16 %v170, %v169
    %v174 = vpack.c.b16 %v172, %v171
    %v178 = vsel %vm39, %v100, 0
    %180 = vmatpush.bf16.msra.mxu0 0
    %181 = vmatpush.bf16.msra.mxu0 0
    %182 = vmatpush.bf16.msra.mxu0 0
    %183 = vmatpush.bf16.msra.mxu0 0
    %184 = vmatpush.bf16.msra.mxu0 0
    %185 = vmatpush.bf16.msra.mxu0 0
    %186 = vmatpush.bf16.msra.mxu0 %v174
    %187 = vmatpush.bf16.msra.mxu0 %v173
    %188 = vmatmul.bf16.gmra.mxu0 %v178
    %v189 = vpop.f32.mrf.mxu0
    %v190 = vadd.f32 0.0, %v189
    %v191 = vpop.f32.mrf.mxu0
    %192 = vdwg.mxu0
    %v197 = vunpack.c.l.b16 %v157
    %v198 = vunpack.c.l.b16 %v158
    %v199 = vunpack.c.l.b16 %v159
    %v200 = vunpack.c.l.b16 %v160
    %v201 = vpack.c.b16 %v198, %v197
    %v202 = vpack.c.b16 %v200, %v199
    %v206 = vsel %vm39, %v72, 0
    %208 = vmatpush.bf16.msra.mxu0 0
    %209 = vmatpush.bf16.msra.mxu0 0
    %210 = vmatpush.bf16.msra.mxu0 0
    %211 = vmatpush.bf16.msra.mxu0 0
    %212 = vmatpush.bf16.msra.mxu0 0
    %213 = vmatpush.bf16.msra.mxu0 0
    %214 = vmatpush.bf16.msra.mxu0 %v202
    %215 = vmatpush.bf16.msra.mxu0 %v201
    %216 = vmatmul.bf16.gmra.mxu0 %v206
    %v217 = vpop.f32.mrf.mxu0
    %v218 = vadd.f32 %v190, %v217
    %v219 = vpop.f32.mrf.mxu0
    %220 = vdwg.mxu0
    %v221 = vld [vmem:[#allocation2 + $0x20] sm:$0xf]
    %v222 = vld [vmem:[#allocation2 + $0x24] sm:$0xf]
    %v223 = vld [vmem:[#allocation2 + $0x28] sm:$0xf]
    %v224 = vld [vmem:[#allocation2 + $0x2c] sm:$0xf]
    %v229 = vunpack.c.l.b16 %v221
    %v230 = vunpack.c.l.b16 %v222
    %v231 = vunpack.c.l.b16 %v223
    %v232 = vunpack.c.l.b16 %v224
    %v233 = vpack.c.b16 %v230, %v229
    %v234 = vpack.c.b16 %v232, %v231
    %v238 = vsel %vm39, %v128, 0
    %240 = vmatpush.bf16.msra.mxu0 0
    %241 = vmatpush.bf16.msra.mxu0 0
    %242 = vmatpush.bf16.msra.mxu0 0
    %243 = vmatpush.bf16.msra.mxu0 0
    %244 = vmatpush.bf16.msra.mxu0 0
    %245 = vmatpush.bf16.msra.mxu0 0
    %246 = vmatpush.bf16.msra.mxu0 %v234
    %247 = vmatpush.bf16.msra.mxu0 %v233
    %248 = vmatmul.bf16.gmra.mxu0 %v238
    %v249 = vpop.f32.mrf.mxu0
    %v250 = vadd.f32 0.0, %v249
    %v251 = vpop.f32.mrf.mxu0
    %252 = vdwg.mxu0
    %v253 = vadd.f32 %v218, %v250
    %v254 = vld [vmem:[#allocation2 + $0x30] sm:$0xf]
    %v255 = vld [vmem:[#allocation2 + $0x34] sm:$0xf]
    %v256 = vld [vmem:[#allocation2 + $0x38] sm:$0xf]
    %v257 = vld [vmem:[#allocation2 + $0x3c] sm:$0xf]
    %v262 = vunpack.c.l.b16 %v254
    %v263 = vunpack.c.l.b16 %v255
    %v264 = vunpack.c.l.b16 %v256
    %v265 = vunpack.c.l.b16 %v257
    %v266 = vpack.c.b16 %v263, %v262
    %v267 = vpack.c.b16 %v265, %v264
    %v271 = vsel %vm39, %v156, 0
    %273 = vmatpush.bf16.msra.mxu0 0
    %274 = vmatpush.bf16.msra.mxu0 0
    %275 = vmatpush.bf16.msra.mxu0 0
    %276 = vmatpush.bf16.msra.mxu0 0
    %277 = vmatpush.bf16.msra.mxu0 0
    %278 = vmatpush.bf16.msra.mxu0 0
    %279 = vmatpush.bf16.msra.mxu0 %v267
    %280 = vmatpush.bf16.msra.mxu0 %v266
    %281 = vmatmul.bf16.gmra.mxu0 %v271
    %v282 = vpop.f32.mrf.mxu0
    %v283 = vadd.f32 0.0, %v282
    %v284 = vpop.f32.mrf.mxu0
    %285 = vdwg.mxu0
    %v286 = vadd.f32 %v253, %v283
    %v287 = vld [vmem:[%s2] sm:$0x1]
    %v289 = vperm.slane %v287, 0
    %v291 = vadd.f32 %v286, %v289
    %v292 = vmax.f32 %v291, 0.0
    %v293 = vpack.c.bf16 %v292, %v292
    %s294 = scalar_lea.vmem [#allocation2], 64
    %v295 = vld [vmem:[%s294] sm:$0xf]
    %v296 = vld [vmem:[%s294 + $0x4] sm:$0xf]
    %v297 = vld [vmem:[%s294 + $0x8] sm:$0xf]
    %v298 = vld [vmem:[%s294 + $0xc] sm:$0xf]
    %v299 = vld [vmem:[%s294 + $0x10] sm:$0xf]
    %v300 = vld [vmem:[%s294 + $0x14] sm:$0xf]
    %v301 = vld [vmem:[%s294 + $0x18] sm:$0xf]
    %v302 = vld [vmem:[%s294 + $0x1c] sm:$0xf]
    %v303 = vld [vmem:[%s294 + $0x20] sm:$0xf]
    %v304 = vld [vmem:[%s294 + $0x24] sm:$0xf]
    %v305 = vld [vmem:[%s294 + $0x28] sm:$0xf]
    %v306 = vld [vmem:[%s294 + $0x2c] sm:$0xf]
    %v307 = vld [vmem:[%s294 + $0x30] sm:$0xf]
    %v308 = vld [vmem:[%s294 + $0x34] sm:$0xf]
    %v309 = vld [vmem:[%s294 + $0x38] sm:$0xf]
    %v310 = vld [vmem:[%s294 + $0x3c] sm:$0xf]
    %s311 = scalar_lea.vmem %s2, 1
    %v312 = vld [vmem:[%s311] sm:$0x1]
    %v314 = vperm.slane %v312, 0
    %v332 = vunpack.c.l.b16 %v295
    %v333 = vunpack.c.l.b16 %v296
    %v334 = vunpack.c.l.b16 %v297
    %v335 = vunpack.c.l.b16 %v298
    %v336 = vunpack.c.l.b16 %v299
    %v337 = vunpack.c.l.b16 %v300
    %v338 = vunpack.c.l.b16 %v301
    %v339 = vunpack.c.l.b16 %v302
    %v340 = vunpack.c.l.b16 %v303
    %v341 = vunpack.c.l.b16 %v304
    %v342 = vunpack.c.l.b16 %v305
    %v343 = vunpack.c.l.b16 %v306
    %v344 = vunpack.c.l.b16 %v307
    %v345 = vunpack.c.l.b16 %v308
    %v346 = vunpack.c.l.b16 %v309
    %v347 = vunpack.c.l.b16 %v310
    %v348 = vpack.c.b16 %v333, %v332
    %v349 = vpack.c.b16 %v335, %v334
    %v350 = vpack.c.b16 %v337, %v336
    %v351 = vpack.c.b16 %v339, %v338
    %v352 = vpack.c.b16 %v341, %v340
    %v353 = vpack.c.b16 %v343, %v342
    %v354 = vpack.c.b16 %v345, %v344
    %v355 = vpack.c.b16 %v347, %v346
    %364 = vmatpush.bf16.msra.mxu0 %v355
    %365 = vmatpush.bf16.msra.mxu0 %v354
    %366 = vmatpush.bf16.msra.mxu0 %v353
    %367 = vmatpush.bf16.msra.mxu0 %v352
    %368 = vmatpush.bf16.msra.mxu0 %v351
    %369 = vmatpush.bf16.msra.mxu0 %v350
    %370 = vmatpush.bf16.msra.mxu0 %v349
    %371 = vmatpush.bf16.msra.mxu0 %v348
    %372 = vmatmul.bf16.gmra.mxu0 %v293
    %v373 = vpop.f32.mrf.mxu0
    %v374 = vadd.f32 %v314, %v373
    %v375 = vpop.f32.mrf.mxu0
    %376 = vdwg.mxu0
    %v377 = vmax.f32 %v374, 0.0
    %v378 = vpack.c.bf16 %v377, %v377
    %v379 = vld [vmem:[%s3] sm:$0xf]
    %v380 = vld [vmem:[%s3 + $0x4] sm:$0xf]
    %v381 = vld [vmem:[%s3 + $0x8] sm:$0xf]
    %v382 = vld [vmem:[%s3 + $0xc] sm:$0xf]
    %v383 = vld [vmem:[%s3 + $0x10] sm:$0xf]
    %v384 = vld [vmem:[%s3 + $0x14] sm:$0xf]
    %v385 = vld [vmem:[%s3 + $0x18] sm:$0xf]
    %v386 = vld [vmem:[%s3 + $0x1c] sm:$0xf]
    %v387 = vld [vmem:[%s3 + $0x20] sm:$0xf]
    %v388 = vld [vmem:[%s3 + $0x24] sm:$0xf]
    %v389 = vld [vmem:[%s3 + $0x28] sm:$0xf]
    %v390 = vld [vmem:[%s3 + $0x2c] sm:$0xf]
    %v391 = vld [vmem:[%s3 + $0x30] sm:$0xf]
    %v392 = vld [vmem:[%s3 + $0x34] sm:$0xf]
    %v393 = vld [vmem:[%s3 + $0x38] sm:$0xf]
    %v394 = vld [vmem:[%s3 + $0x3c] sm:$0xf]
    %v395 = vld [vmem:[%s4] sm:$0x1]
    %v397 = vperm.slane %v395, 0
    %v415 = vunpack.c.l.b16 %v379
    %v416 = vunpack.c.l.b16 %v380
    %v417 = vunpack.c.l.b16 %v381
    %v418 = vunpack.c.l.b16 %v382
    %v419 = vunpack.c.l.b16 %v383
    %v420 = vunpack.c.l.b16 %v384
    %v421 = vunpack.c.l.b16 %v385
    %v422 = vunpack.c.l.b16 %v386
    %v423 = vunpack.c.l.b16 %v387
    %v424 = vunpack.c.l.b16 %v388
    %v425 = vunpack.c.l.b16 %v389
    %v426 = vunpack.c.l.b16 %v390
    %v427 = vunpack.c.l.b16 %v391
    %v428 = vunpack.c.l.b16 %v392
    %v429 = vunpack.c.l.b16 %v393
    %v430 = vunpack.c.l.b16 %v394
    %v431 = vpack.c.b16 %v416, %v415
    %v432 = vpack.c.b16 %v418, %v417
    %v433 = vpack.c.b16 %v420, %v419
    %v434 = vpack.c.b16 %v422, %v421
    %v435 = vpack.c.b16 %v424, %v423
    %v436 = vpack.c.b16 %v426, %v425
    %v437 = vpack.c.b16 %v428, %v427
    %v438 = vpack.c.b16 %v430, %v429
    %447 = vmatpush.bf16.msra.mxu0 %v438
    %448 = vmatpush.bf16.msra.mxu0 %v437
    %449 = vmatpush.bf16.msra.mxu0 %v436
    %450 = vmatpush.bf16.msra.mxu0 %v435
    %451 = vmatpush.bf16.msra.mxu0 %v434
    %452 = vmatpush.bf16.msra.mxu0 %v433
    %453 = vmatpush.bf16.msra.mxu0 %v432
    %454 = vmatpush.bf16.msra.mxu0 %v431
    %455 = vmatmul.bf16.gmra.mxu0 %v378
    %v456 = vpop.f32.mrf.mxu0
    %v457 = vadd.f32 %v397, %v456
    %v458 = vpop.f32.mrf.mxu0
    %459 = vdwg.mxu0
    %vm460 = vcmask 64512
    %461 = vst.msk [vmem:[#allocation5] sm:$0xff] %vm460, %v457
    // Predicated region
    $region26: #{tpu_custom_call.1} parent=1 // pred_check
      _
    $region27: #{tpu_custom_call.1} parent=1 // pred_check_branch
      %463 = sbr.rel (0) target = $region29
    $region28: #{tpu_custom_call.1} parent=1 // pred_region
      %465 = vsyncadd [#allocation4], 0
      %s467 = sshll.u32 [#allocation5], 4
      %s468 = int_to_ptr.vmem [resolvable:$true] %s467
      %s469 = sshll.u32 %s5, 4
      %s470 = int_to_ptr.hbm [resolvable:$true] %s469
      %472 = dma.vmem_to_hbm [thread:$0]  %s468, 128, %s470, [#allocation4]
    $region29: #{tpu_custom_call.1} parent=1 // pred_fallthru
      _
    // Predicated region
    $region30: #{tpu_custom_call.1} parent=1 // pred_check
      _
    $region31: #{tpu_custom_call.1} parent=1 // pred_check_branch
      %474 = sbr.rel (0) target = $region33
    $region32: #{tpu_custom_call.1} parent=1 // pred_region
      %476 = dma.done [#allocation4], 128
    $region33: #{tpu_custom_call.1} parent=1 // pred_fallthru
      _
    %477 = vsyncpa [#allocation3], 1
    %478 = vsyncpa [#allocation4], 1

</llo_original>
